<compile_context>
chip_gen: v5e
topology: v5e:2x2
jax: 0.10.0
libtpu: 0.0.40
codegen_flags: <defaults>
</compile_context>

<pallas_src>
import jax
import jax.numpy as jnp
from jax.experimental import pallas as pl
from jax.experimental.pallas import tpu as pltpu


def linear_softmax_kernel(x_ref, w_ref, b_ref, o_ref):
    # x_ref: [B, In]   w_ref: [In, Np]   b_ref: [1, Np]   o_ref: [B, Np]
    logits = jnp.dot(
        x_ref[...], w_ref[...], preferred_element_type=jnp.float32
    ) + b_ref[...]  # broadcast [1, Np] over rows

    # numerically-stable softmax over dim=1 (padded lanes carry -1e30 bias
    # so exp(logit - max) underflows to 0 and the denominator is exact)
    m = jnp.max(logits, axis=1, keepdims=True)
    e = jnp.exp(logits - m)
    denom = jnp.sum(e, axis=1, keepdims=True)
    o_ref[...] = (e * pl.reciprocal(denom, approx=True)).astype(o_ref.dtype)


def linear_model_forward(x, weight, bias):
    """x: [B, In], weight: [Out, In] (PyTorch layout), bias: [Out].

    Returns softmax(x @ weight.T + bias, axis=1), shape [B, Out].
    """
    B, In = x.shape
    Out = weight.shape[0]

    # Lane-dense padded output width (multiple of 128).
    Np = max(128, ((Out + 127) // 128) * 128)

    # One-time layout plumbing in the wrapper (not inside the kernel):
    #  - transpose weight to [In, Out] so the kernel does a plain x @ w
    #  - pad weight cols with 0, bias with -1e30 (padded lanes vanish from
    #    the softmax denominator)
    w_t = jnp.zeros((In, Np), dtype=weight.dtype).at[:, :Out].set(weight.T)
    b_p = jnp.full((1, Np), -1e30, dtype=jnp.float32).at[:, :Out].set(
        bias.reshape(1, Out).astype(jnp.float32)
    )

    # Single block, everything VMEM-resident: no grid, no pipeline overhead.
    # TODO(synk): if B grows large, add a batch grid axis (marked "parallel")
    # with the weight block kept resident, instead of this single block.
    out_padded = pl.pallas_call(
        linear_softmax_kernel,
        out_shape=jax.ShapeDtypeStruct((B, Np), jnp.float32),
        in_specs=[
            pl.BlockSpec(memory_space=pltpu.MemorySpace.VMEM),
            pl.BlockSpec(memory_space=pltpu.MemorySpace.VMEM),
            pl.BlockSpec(memory_space=pltpu.MemorySpace.VMEM),
        ],
        out_specs=pl.BlockSpec(memory_space=pltpu.MemorySpace.VMEM),
    )(x, w_t, b_p)

    return out_padded[:, :Out]


if __name__ == "__main__":
    # Small shapes consistent with the module: batch=8, input_size=32, output_size=16
    B, In, Out = 8, 32, 16

    key = jax.random.PRNGKey(0)
    kx, kw, kb = jax.random.split(key, 3)

    # Deterministic params mimicking nn.Linear's U(-1/sqrt(In), 1/sqrt(In)) init
    bound = 1.0 / (In ** 0.5)
    weight = jax.random.uniform(kw, (Out, In), jnp.float32, -bound, bound)
    bias = jax.random.uniform(kb, (Out,), jnp.float32, -bound, bound)
    x = jax.random.normal(kx, (B, In), jnp.float32)

    out = jax.block_until_ready(linear_model_forward(x, weight, bias))

    # sanity check against pure-JAX reference
    ref = jax.nn.softmax(x @ weight.T + bias, axis=1)
    assert out.shape == (B, Out)
    # approx=True reciprocal (EUP vrcp) -> slightly looser tolerance
    assert jnp.allclose(out, ref, atol=2e-3, rtol=2e-3), float(
        jnp.max(jnp.abs(out - ref))
    )

    print("KERNEL_OK")
</pallas_src>

<mosaic_0001>
module attributes {stable_mosaic.version = 11 : i64} {
  func.func @linear_softmax_kernel(%arg0: memref<8x32xf32, #tpu.memory_space<vmem>>, %arg1: memref<32x128xf32, #tpu.memory_space<vmem>>, %arg2: memref<1x128xf32, #tpu.memory_space<vmem>>, %arg3: memref<8x128xf32, #tpu.memory_space<vmem>>) attributes {dimension_semantics = [], scalar_prefetch = 0 : i64, scratch_operands = 0 : i64, tpu.core_type = #tpu.core_type<tc>} {
    %c0 = arith.constant 0 : index
    %c0_0 = arith.constant 0 : index
    %0 = vector.load %arg0[%c0, %c0_0] : memref<8x32xf32, #tpu.memory_space<vmem>>, vector<8x32xf32>
    %c0_1 = arith.constant 0 : index
    %c0_2 = arith.constant 0 : index
    %1 = vector.load %arg1[%c0_1, %c0_2] : memref<32x128xf32, #tpu.memory_space<vmem>>, vector<32x128xf32>
    %cst = arith.constant dense<0.000000e+00> : vector<8x128xf32>
    %2 = tpu.matmul %0, %1, %cst {dimension_numbers = #tpu.dot_dimension_numbers<[1], [0], [0], [1], [0, 0, 1, 1], [], []>} : vector<8x32xf32>, vector<32x128xf32>, vector<8x128xf32> -> vector<8x128xf32>
    %c0_3 = arith.constant 0 : index
    %c0_4 = arith.constant 0 : index
    %3 = vector.load %arg2[%c0_3, %c0_4] : memref<1x128xf32, #tpu.memory_space<vmem>>, vector<1x128xf32>
    %4 = vector.broadcast %3 : vector<1x128xf32> to vector<8x128xf32>
    %5 = arith.addf %2, %4 : vector<8x128xf32>
    %cst_5 = arith.constant dense<0xFF800000> : vector<8xf32>
    %6 = vector.multi_reduction <maximumf>, %5, %cst_5 [1] : vector<8x128xf32> to vector<8xf32>
    %7 = vector.shape_cast %6 : vector<8xf32> to vector<8x1xf32>
    %8 = vector.broadcast %7 : vector<8x1xf32> to vector<8x128xf32>
    %9 = arith.subf %5, %8 : vector<8x128xf32>
    %10 = math.exp %9 : vector<8x128xf32>
    %cst_6 = arith.constant dense<0.000000e+00> : vector<8xf32>
    %11 = vector.multi_reduction <add>, %10, %cst_6 [1] : vector<8x128xf32> to vector<8xf32>
    %12 = vector.shape_cast %11 : vector<8xf32> to vector<8x1xf32>
    %13 = tpu.reciprocal %12 {approx = true} : vector<8x1xf32> -> vector<8x1xf32>
    %14 = vector.broadcast %13 : vector<8x1xf32> to vector<8x128xf32>
    %15 = arith.mulf %10, %14 : vector<8x128xf32>
    %c0_7 = arith.constant 0 : index
    %c0_8 = arith.constant 0 : index
    %16 = vector.load %arg3[%c0_7, %c0_8] : memref<8x128xf32, #tpu.memory_space<vmem>>, vector<8x128xf32>
    tpu.vector_store %arg3[%c0_7, %c0_8], %15 {strides = array<i32>} : memref<8x128xf32, #tpu.memory_space<vmem>>, vector<8x128xf32>,
    return
  }
}

</mosaic_0001>

<llo_original>
// kernel: tpu_custom_call.1
$region0: #{tpu_custom_call.1}
  #allocation0 [shape = 'u32[]', space=smem, size = 0x4, offset = 0x4, fixed_abs, tag = 'smem constant byte address 0x4 - core index']
  #allocation1 [shape = 'u32[72,128]{1,0:T(1,128)}', space=vmem, size = 0x9000, scoped, tag = 'internal scratch']
  %s0 = inlined_call_operand.hbm [shape: f32[8,32], index: 0, kind: input, shape index: {}]
  %s1 = inlined_call_operand.hbm [shape: f32[32,128], index: 1, kind: input, shape index: {}]
  %s2 = inlined_call_operand.vmem [shape: f32[1,128], index: 2, kind: input, shape index: {}]
  %s3 = inlined_call_operand.hbm [shape: f32[8,128], index: 3, kind: output, shape index: {}]
  %s4 = sld [smem:[#allocation0]]
  $region30: #{tpu_custom_call.1} parent=0
    _
  %s6 = ssub.s32 1, %s4
  %s7 = scalar_select 0, %s6, %s4
  $region1: #{tpu_custom_call.1} parent=0
    #allocation2 [shape = 'u8[4096]{0}', space=vmem, size = 0x1000, scoped, tag = 'input window, operand 0, single buffered']
    #allocation3 [shape = 's32[1]{0}', space=sflag, size = 0x4, scoped, tag = 'scoped memory for tpu_custom_call.1']
    #allocation4 [shape = 's32[1]{0}', space=sflag, size = 0x4, scoped, tag = 'scoped memory for tpu_custom_call.1']
    #allocation5 [shape = 'u8[16384]{0}', space=vmem, size = 0x4000, scoped, tag = 'input window, operand 1, single buffered']
    #allocation6 [shape = 's32[1]{0}', space=sflag, size = 0x4, scoped, tag = 'scoped memory for tpu_custom_call.1']
    #allocation7 [shape = 'u8[4096]{0}', space=vmem, size = 0x1000, scoped, tag = 'output window, operand 0, single buffered']
    %8 = vsyncpa [#allocation3], 0
    %9 = vsyncpa [#allocation6], 0
    %10 = vsyncpa [#allocation4], 0
    // Predicated region
    $region2: #{tpu_custom_call.1} parent=1 // pred_check
      _
    $region3: #{tpu_custom_call.1} parent=1 // pred_check_branch
      %12 = sbr.rel (0) target = $region5
    $region4: #{tpu_custom_call.1} parent=1 // pred_region
      %14 = vsyncadd [#allocation3], 0
      %s16 = sshll.u32 %s0, 4
      %s17 = int_to_ptr.hbm [resolvable:$true] %s16
      %s18 = sshll.u32 [#allocation2], 4
      %s19 = int_to_ptr.vmem [resolvable:$true] %s18
      %21 = dma.hbm_to_vmem [thread:$0]  %s17, 128, %s19, [#allocation3]
    $region5: #{tpu_custom_call.1} parent=1 // pred_fallthru
      _
    // Predicated region
    $region6: #{tpu_custom_call.1} parent=1 // pred_check
      _
    $region7: #{tpu_custom_call.1} parent=1 // pred_check_branch
      %23 = sbr.rel (0) target = $region9
    $region8: #{tpu_custom_call.1} parent=1 // pred_region
      %25 = vsyncadd [#allocation6], 0
      %s26 = sshll.u32 %s1, 4
      %s27 = int_to_ptr.hbm [resolvable:$true] %s26
      %s28 = sshll.u32 [#allocation5], 4
      %s29 = int_to_ptr.vmem [resolvable:$true] %s28
      %34 = dma.hbm_to_vmem [thread:$0]  %s27, 512, %s29, [#allocation6], 128, 128, 8
    $region9: #{tpu_custom_call.1} parent=1 // pred_fallthru
      _
    // Predicated region
    $region10: #{tpu_custom_call.1} parent=1 // pred_check
      _
    $region11: #{tpu_custom_call.1} parent=1 // pred_check_branch
      %36 = sbr.rel (0) target = $region13
    $region12: #{tpu_custom_call.1} parent=1 // pred_region
      _
    $region13: #{tpu_custom_call.1} parent=1 // pred_fallthru
      _
    // Predicated region
    $region14: #{tpu_custom_call.1} parent=1 // pred_check
      _
    $region15: #{tpu_custom_call.1} parent=1 // pred_check_branch
      %38 = sbr.rel (0) target = $region17
    $region16: #{tpu_custom_call.1} parent=1 // pred_region
      %40 = dma.done [#allocation3], 128
    $region17: #{tpu_custom_call.1} parent=1 // pred_fallthru
      _
    // Predicated region
    $region18: #{tpu_custom_call.1} parent=1 // pred_check
      _
    $region19: #{tpu_custom_call.1} parent=1 // pred_check_branch
      %42 = sbr.rel (0) target = $region21
    $region20: #{tpu_custom_call.1} parent=1 // pred_region
      %44 = dma.done [#allocation6], 512
    $region21: #{tpu_custom_call.1} parent=1 // pred_fallthru
      _
    %v45 = vld [vmem:[#allocation2] sm:$0xff]
    %v46 = vld [vmem:[#allocation5] sm:$0xff]
    %v47 = vld [vmem:[#allocation5 + $0x8] sm:$0xff]
    %v48 = vld [vmem:[#allocation5 + $0x10] sm:$0xff]
    %v49 = vld [vmem:[#allocation5 + $0x18] sm:$0xff]
    %v50 = vld [vmem:[%s2] sm:$0x1]
    %v52 = vperm.slane %v50, 0
    %vm54 = vcmask 261120
    %v56 = vsel %vm54, %v45, 0
    %58 = vmatpush.msra.mxu0 0.0
    %59 = vmatpush.msra.mxu0 0.0
    %60 = vmatpush.msra.mxu0 0.0
    %61 = vmatpush.msra.mxu0 0.0
    %62 = vmatpush.msra.mxu0 0.0
    %63 = vmatpush.msra.mxu0 0.0
    %64 = vmatpush.msra.mxu0 0.0
    %65 = vmatpush.msra.mxu0 0.0
    %66 = vmatpush.msra.mxu0 0.0
    %67 = vmatpush.msra.mxu0 0.0
    %68 = vmatpush.msra.mxu0 0.0
    %69 = vmatpush.msra.mxu0 0.0
    %70 = vmatpush.msra.mxu0 %v49
    %71 = vmatpush.msra.mxu0 %v48
    %72 = vmatpush.msra.mxu0 %v47
    %73 = vmatpush.msra.mxu0 %v46
    %74 = vmatmul.f32.gmra.mxu0 %v56
    %v75 = vpop.f32.mrf.mxu0
    %v76 = vadd.f32 %v52, %v75
    %77 = vdwg.mxu0
    %78 = vmax.xlane.f32.xlu0 %v76
    %v79 = vpop.xlane.xlu0 %78
    %v80 = vsub.f32 %v76, %v79
    %v81 = vmul.f32 %v80, 1.442695
    %v82 = vpow.pop %v81
    %83 = vadd.xlane.f32.xlu0 %v82
    %v84 = vpop.xlane.xlu0 %83
    %v85 = vrcp.pop %v84
    %v86 = vmul.f32 %v82, %v85
    %87 = vst [vmem:[#allocation7] sm:$0xff] %v86
    // Predicated region
    $region22: #{tpu_custom_call.1} parent=1 // pred_check
      _
    $region23: #{tpu_custom_call.1} parent=1 // pred_check_branch
      %89 = sbr.rel (0) target = $region25
    $region24: #{tpu_custom_call.1} parent=1 // pred_region
      %91 = vsyncadd [#allocation4], 0
      %s93 = sshll.u32 [#allocation7], 4
      %s94 = int_to_ptr.vmem [resolvable:$true] %s93
      %s95 = sshll.u32 %s3, 4
      %s96 = int_to_ptr.hbm [resolvable:$true] %s95
      %98 = dma.vmem_to_hbm [thread:$0]  %s94, 128, %s96, [#allocation4]
    $region25: #{tpu_custom_call.1} parent=1 // pred_fallthru
      _
    // Predicated region
    $region26: #{tpu_custom_call.1} parent=1 // pred_check
      _
    $region27: #{tpu_custom_call.1} parent=1 // pred_check_branch
      %100 = sbr.rel (0) target = $region29
    $region28: #{tpu_custom_call.1} parent=1 // pred_region
      %102 = dma.done [#allocation4], 128
    $region29: #{tpu_custom_call.1} parent=1 // pred_fallthru
      _
    %103 = vsyncpa [#allocation3], 1
    %104 = vsyncpa [#allocation6], 1
    %105 = vsyncpa [#allocation4], 1

</llo_original>
